<compile_context>
chip_gen: v5e
topology: v5e:2x2
jax: 0.10.0
libtpu: 0.0.40
codegen_flags: <defaults>
</compile_context>

<pallas_src>
import functools

import jax
import jax.numpy as jnp
from jax import lax
from jax.experimental import pallas as pl
from jax.experimental.pallas import tpu as pltpu

BN_EPS = 1e-5          # PyTorch BatchNorm default eps
_LANE = 128            # TPU lane width
_BF16_SUB = 16         # bf16 sublane packing (2 rows / sublane)
_F32_SUB = 8


def _round_up(n, m):
    return ((n + m - 1) // m) * m


def _pick_tile(total, target, align=_LANE):
    """Largest multiple of `align` that divides `total` and is <= target."""
    assert total % align == 0
    t = min(total, max(align, (target // align) * align))
    while total % t != 0:
        t -= align
    return t


def _vmem_limit_bytes():
    """Per-generation VMEM limit with headroom (v7x: 64 MiB phys -> ~48 MiB)."""
    try:
        cap = int(pltpu.get_tpu_info().vmem_capacity_bytes)
        return int(min(cap * 3 // 4, 100 * 1024 * 1024))
    except Exception:
        return 48 * 1024 * 1024


# ----------------------------------------------------------------------------
# Pallas kernel 1: one shared-MLP layer.
#   fused: previous layer's (host-folded) BN+ReLU -> 1x1-conv matmul ->
#          masked per-tile partial BN statistics of this layer's pre-activation.
#   One matmul per grid step; grid = (head, sample, query-tile), all parallel.
# ----------------------------------------------------------------------------
def _mlp_layer_kernel(a_ref, w_ref, s_ref, b_ref, v_ref, z_ref, st_ref, *,
                      apply_prev_act):
    if apply_prev_act:
        # a_ref block: (1, 1, C_in, m_tile) bf16 (4-D activation layout)
        a = a_ref[0, 0].astype(jnp.float32)
        a16 = jnp.maximum(a * s_ref[0] + b_ref[0], 0.0).astype(jnp.bfloat16)
    else:
        # layer 0 reads the gather-layout input through a flat view:
        # a_ref block: (1, C_in, m_tile) bf16
        a16 = a_ref[0]
    # (C_out, C_in) x (C_in, m_tile) on the MXU, f32 accumulation.
    z = jnp.dot(w_ref[0], a16, preferred_element_type=jnp.float32)
    z_ref[0, 0] = z.astype(z_ref.dtype)
    # Padded query columns are excluded from the batch statistics.
    zm = z * v_ref[...]
    st_ref[0, 0] = jnp.concatenate(
        [jnp.sum(zm, axis=1, keepdims=True),
         jnp.sum(zm * z, axis=1, keepdims=True)], axis=1)


def _mlp_layer_pass(a, w, scale_prev, bias_prev, mask, *, nsample, m_pad,
                    m_tile, first, vmem_limit):
    nhead, c_out, c_in = w.shape
    n_mt = m_pad // m_tile
    if first:
        # a: (nhead, c_in, nsample * m_pad), k-major flat neighbourhood axis.
        a_spec = pl.BlockSpec((1, c_in, m_tile),
                              lambda h, k, i: (h, 0, k * n_mt + i))
    else:
        # a: (nhead, nsample, c_in, m_pad)
        a_spec = pl.BlockSpec((1, 1, c_in, m_tile),
                              lambda h, k, i: (h, k, 0, i))
    kernel = functools.partial(_mlp_layer_kernel, apply_prev_act=not first)
    return pl.pallas_call(
        kernel,
        grid=(nhead, nsample, n_mt),
        in_specs=[
            a_spec,
            pl.BlockSpec((1, c_out, c_in), lambda h, k, i: (h, 0, 0)),
            pl.BlockSpec((1, c_in, 1), lambda h, k, i: (h, 0, 0)),
            pl.BlockSpec((1, c_in, 1), lambda h, k, i: (h, 0, 0)),
            pl.BlockSpec((1, m_tile), lambda h, k, i: (0, i)),
        ],
        out_specs=[
            pl.BlockSpec((1, 1, c_out, m_tile), lambda h, k, i: (h, k, 0, i)),
            pl.BlockSpec((1, 1, c_out, 2),
                         lambda h, k, i: (h, k * n_mt + i, 0, 0)),
        ],
        out_shape=[
            jax.ShapeDtypeStruct((nhead, nsample, c_out, m_pad), jnp.bfloat16),
            jax.ShapeDtypeStruct((nhead, nsample * n_mt, c_out, 2), jnp.float32),
        ],
        compiler_params=pltpu.CompilerParams(
            dimension_semantics=("parallel", "parallel", "parallel"),
            vmem_limit_bytes=vmem_limit),
    )(a, w, scale_prev, bias_prev, mask)


# ----------------------------------------------------------------------------
# Pallas kernel 2: last-MLP BN+ReLU + max-pool over nsample + out_conv 1x1
#                  matmul accumulated per head (+bias) + its partial BN stats.
# ----------------------------------------------------------------------------
def _pool_outconv_kernel(z_ref, s_ref, b_ref, w_ref, cb_ref, v_ref,
                         zo_ref, st_ref, *, nhead, nsample):
    acc = None
    for h in range(nhead):                       # static, small
        s = s_ref[h]                             # (C, 1) f32, folded BN
        b = b_ref[h]
        pooled = None
        for k in range(nsample):                 # static, small
            a = jnp.maximum(z_ref[h, k].astype(jnp.float32) * s + b, 0.0)
            pooled = a if pooled is None else jnp.maximum(pooled, a)
        # per-head accumulate instead of a (nhead*C, m) concat (vreg pressure)
        zh = jnp.dot(w_ref[h], pooled.astype(jnp.bfloat16),
                     preferred_element_type=jnp.float32)
        acc = zh if acc is None else acc + zh
    zo = acc + cb_ref[...]                       # out_conv bias (zero-init)
    zo_ref[...] = zo
    zm = zo * v_ref[...]
    st_ref[0] = jnp.concatenate(
        [jnp.sum(zm, axis=1, keepdims=True),
         jnp.sum(zm * zo, axis=1, keepdims=True)], axis=1)


def _pool_outconv_pass(z4, scale, bias, w_out, b_out, mask, *, q_tile,
                       vmem_limit):
    nhead, nsample, c, m_pad = z4.shape
    d_pad = w_out.shape[1]
    n_qt = m_pad // q_tile
    kernel = functools.partial(_pool_outconv_kernel, nhead=nhead,
                               nsample=nsample)
    return pl.pallas_call(
        kernel,
        grid=(n_qt,),
        in_specs=[
            pl.BlockSpec((nhead, nsample, c, q_tile), lambda i: (0, 0, 0, i)),
            pl.BlockSpec((nhead, c, 1), lambda i: (0, 0, 0)),
            pl.BlockSpec((nhead, c, 1), lambda i: (0, 0, 0)),
            pl.BlockSpec((nhead, d_pad, c), lambda i: (0, 0, 0)),
            pl.BlockSpec((d_pad, 1), lambda i: (0, 0)),
            pl.BlockSpec((1, q_tile), lambda i: (0, i)),
        ],
        out_specs=[
            pl.BlockSpec((d_pad, q_tile), lambda i: (0, i)),
            pl.BlockSpec((1, d_pad, 2), lambda i: (i, 0, 0)),
        ],
        out_shape=[
            jax.ShapeDtypeStruct((d_pad, m_pad), jnp.float32),
            jax.ShapeDtypeStruct((n_qt, d_pad, 2), jnp.float32),
        ],
        compiler_params=pltpu.CompilerParams(
            dimension_semantics=("parallel",),
            vmem_limit_bytes=vmem_limit),
    )(z4, scale, bias, w_out, b_out, mask)


# ----------------------------------------------------------------------------
# Host helpers
# ----------------------------------------------------------------------------
def _bn_fold(stat_sums, count, gamma, beta):
    """(sum, sum_sq) -> per-channel scale/bias so that BN(x) == x*scale + bias."""
    mean = stat_sums[..., 0] / count
    var = jnp.maximum(stat_sums[..., 1] / count - mean * mean, 0.0)
    scale = gamma * lax.rsqrt(var + BN_EPS)
    bias = beta - mean * scale
    return scale, bias


def _ball_query(radius, nsample, src_xyz, src_bids, dst_xyz, dst_bids):
    """Deterministic in-radius query: first-nsample hits, pad with first hit,
    empty mask when no neighbour exists (idx forced to 0)."""
    # TODO(synk): the CUDA rv_rand_query range-image neighbour search (rv_map /
    # dilation / query_range) has no clean Pallas equivalent; this O(M*N) ball
    # query reproduces the idx / empty-mask semantics as JAX glue.
    d2 = jnp.sum((dst_xyz[:, None, :] - src_xyz[None, :, :]) ** 2, axis=-1)
    within = (d2 < radius * radius) & (dst_bids[:, None] == src_bids[None, :])
    order = jnp.argsort(jnp.where(within, 0, 1), axis=1)      # stable: hits first
    counts = jnp.sum(within, axis=1)
    idx = order[:, :nsample]
    valid = jnp.arange(nsample)[None, :] < counts[:, None]
    idx = jnp.where(valid, idx, order[:, :1])
    empty = counts == 0
    idx = jnp.where(empty[:, None], 0, idx)
    return idx.astype(jnp.int32), empty


# ----------------------------------------------------------------------------
# Parameters (mirrors DynamicKNNLayer.__init__ + init_weights)
# ----------------------------------------------------------------------------
def init_params(key, *, in_channels, d_model, dim_feedforward, nhead, use_xyz):
    ds = d_model // nhead
    cq = ds + (3 if use_xyz else 0)
    cx = 2 * cq
    c_in_pad = _round_up(cx, _BF16_SUB)           # bf16 sublane packing
    d_pad = _round_up(d_model, _F32_SUB)

    def _linear(k, fin, fout):                    # nn.Linear default init
        k1, k2 = jax.random.split(k)
        bound = 1.0 / (fin ** 0.5)
        return {"w": jax.random.uniform(k1, (fout, fin), jnp.float32, -bound, bound),
                "b": jax.random.uniform(k2, (fout,), jnp.float32, -bound, bound)}

    key, kq, kk = jax.random.split(key, 3)
    params = {"fc_q": _linear(kq, in_channels[1], d_model),
              "fc_k": _linear(kk, in_channels[0], d_model),
              "mlp": [], "meta": {"c_in_pad": c_in_pad, "d_pad": d_pad}}

    cin, cin_pad = cx, c_in_pad
    for cout in dim_feedforward:
        cout_pad = _round_up(cout, _BF16_SUB)
        ws = []
        for _ in range(nhead):
            key, sub = jax.random.split(key)
            w = jax.random.normal(sub, (cout, cin), jnp.float32) * (2.0 / cin) ** 0.5
            ws.append(jnp.zeros((cout_pad, cin_pad), jnp.float32).at[:cout, :cin].set(w))
        params["mlp"].append({
            "w": jnp.stack(ws, axis=0).astype(jnp.bfloat16),   # pre-cast weights
            "gamma": jnp.ones((nhead, cout_pad), jnp.float32),
            "beta": jnp.zeros((nhead, cout_pad), jnp.float32)})
        cin, cin_pad = cout, cout_pad

    key, sub = jax.random.split(key)
    w = (jax.random.normal(sub, (d_model, nhead * cin), jnp.float32)
         * (2.0 / (nhead * cin)) ** 0.5)                        # kaiming_normal_
    w_heads = jnp.zeros((nhead, d_pad, cin_pad), jnp.float32)
    for h in range(nhead):
        w_heads = w_heads.at[h, :d_model, :cin].set(w[:, h * cin:(h + 1) * cin])
    params["out"] = {"w": w_heads.astype(jnp.bfloat16),         # per-head split
                     "b": jnp.zeros((d_pad, 1), jnp.float32),   # init_weights: bias=0
                     "gamma": jnp.ones((d_pad,), jnp.float32),
                     "beta": jnp.zeros((d_pad,), jnp.float32)}
    params["meta"]["c_last_pad"] = cin_pad
    return params


# ----------------------------------------------------------------------------
# Full forward (== DynamicKNNLayer.forward)
# ----------------------------------------------------------------------------
def dynamic_knn_layer_forward(params, cfg, src_xyz, src_feats, dst_xyz, dst_feats,
                              dst_rv_coords, src_batch_ids, *,
                              m_tile_target=8192, q_tile_target=1024):
    nhead, d_model = cfg["nhead"], cfg["d_model"]
    nsample, radius, use_xyz = cfg["nsample"], cfg["radius"], cfg["use_xyz"]
    meta = params["meta"]
    M = dst_xyz.shape[0]
    ds = d_model // nhead

    # fc_q / fc_k (plain dense layers; XLA handles these fine).
    q_all = dst_feats @ params["fc_q"]["w"].T + params["fc_q"]["b"]
    k_all = src_feats @ params["fc_k"]["w"].T + params["fc_k"]["b"]

    dst_bids = dst_rv_coords[:, 0].astype(jnp.int32)
    idx, empty = _ball_query(radius, nsample, src_xyz,
                             src_batch_ids.astype(jnp.int32), dst_xyz, dst_bids)

    cq = ds + (3 if use_xyz else 0)
    cx = 2 * cq
    cx_pad = meta["c_in_pad"]
    m_pad = _round_up(M, _LANE)
    m_tile = _pick_tile(m_pad, m_tile_target)
    q_tile = _pick_tile(m_pad, q_tile_target)
    vmem_limit = _vmem_limit_bytes()

    # ---- build x directly in the gather layout (nhead, cx, nsample, M) ------
    # No transpose of the big activation tensor; the gather already produces
    # (cq, nsample, M) per head.
    # TODO(synk): longer term, scalar-prefetch `idx` (PrefetchScalarGridSpec)
    # and gather K rows inside the first MLP kernel to avoid materializing x.
    q_t, k_t = q_all.T, k_all.T
    xs = []
    for h in range(nhead):
        qh = q_t[h * ds:(h + 1) * ds]                             # (ds, M)
        kh = k_t[h * ds:(h + 1) * ds]                             # (ds, N)
        if use_xyz:
            qh = jnp.concatenate([qh, dst_xyz.T], axis=0)         # (cq, M)
            kh = jnp.concatenate([kh, src_xyz.T], axis=0)         # (cq, N)
        gk = jnp.take(kh, idx.T, axis=1)                          # (cq, ns, M)
        xh = jnp.concatenate(
            [gk - qh[:, None, :],
             jnp.broadcast_to(qh[:, None, :], (cq, nsample, M))], axis=0)
        xs.append(jnp.where(empty[None, None, :], 0.0, xh))       # x[knn_empty] = 0
    x = jnp.stack(xs, axis=0)                                     # (nhead, cx, ns, M)
    x = jnp.pad(x, ((0, 0), (0, cx_pad - cx), (0, 0), (0, m_pad - M)))
    a = x.astype(jnp.bfloat16).reshape(nhead, cx_pad, nsample * m_pad)

    mask_q = (jnp.arange(m_pad) < M).astype(jnp.float32).reshape(1, m_pad)

    # ---- shared MLP: one fused Pallas pass per layer (global-BN barriers) ---
    count_mlp = float(nsample * M)
    scale = jnp.ones((nhead, cx_pad, 1), jnp.float32)             # unused in layer 0
    bias = jnp.zeros((nhead, cx_pad, 1), jnp.float32)
    first = True
    for layer in params["mlp"]:
        z, stats = _mlp_layer_pass(a, layer["w"], scale, bias, mask_q,
                                   nsample=nsample, m_pad=m_pad, m_tile=m_tile,
                                   first=first, vmem_limit=vmem_limit)
        s, b = _bn_fold(jnp.sum(stats, axis=1), count_mlp,
                        layer["gamma"], layer["beta"])
        scale, bias = s[..., None], b[..., None]
        a, first = z, False

    # ---- last BN+ReLU + max-pool + per-head out_conv accumulate -------------
    zo, stats_o = _pool_outconv_pass(a, scale, bias, params["out"]["w"],
                                     params["out"]["b"], mask_q,
                                     q_tile=q_tile, vmem_limit=vmem_limit)
    s_o, b_o = _bn_fold(jnp.sum(stats_o, axis=0), float(M),
                        params["out"]["gamma"], params["out"]["beta"])

    # ---- out_conv BN + ReLU + slice + transpose: left to XLA to fuse --------
    out = jnp.maximum(zo * s_o[:, None] + b_o[:, None], 0.0)
    return out[:d_model, :M].T                                    # (M, d_model)


# ----------------------------------------------------------------------------
if __name__ == "__main__":
    key = jax.random.PRNGKey(0)
    # Small shapes consistent with the module: 2 batches, 160 src / 200 dst
    # points, 8-dim features, d_model=32, 2 heads, MLP [32, 32], 8 neighbours.
    N, M = 160, 200
    in_channels = [8, 8]                  # [src_feat_dim, dst_feat_dim]
    d_model, nhead = 32, 2
    dim_feedforward = [32, 32]
    radius, nsample = 1.0, 8
    use_xyz = True

    k1, k2, k3, k4, kp = jax.random.split(key, 5)
    src_xyz = jax.random.uniform(k1, (N, 3), jnp.float32, 0.0, 2.0)
    dst_xyz = jax.random.uniform(k2, (M, 3), jnp.float32, 0.0, 2.0)
    src_feats = jax.random.normal(k3, (N, in_channels[0]), jnp.float32)
    dst_feats = jax.random.normal(k4, (M, in_channels[1]), jnp.float32)
    src_bids = jnp.concatenate([jnp.zeros((N // 2,), jnp.int32),
                                jnp.ones((N - N // 2,), jnp.int32)])
    dst_bids = jnp.concatenate([jnp.zeros((M // 2,), jnp.int32),
                                jnp.ones((M - M // 2,), jnp.int32)])
    dst_rv_coords = jnp.stack(
        [dst_bids, jnp.zeros((M,), jnp.int32), jnp.zeros((M,), jnp.int32)], axis=1)

    cfg = dict(d_model=d_model, nhead=nhead, radius=radius, nsample=nsample,
               use_xyz=use_xyz, dilation=(1, 1), query_range=(3, 3))
    params = init_params(kp, in_channels=in_channels, d_model=d_model,
                         dim_feedforward=dim_feedforward, nhead=nhead,
                         use_xyz=use_xyz)

    out = dynamic_knn_layer_forward(params, cfg, src_xyz, src_feats, dst_xyz,
                                    dst_feats, dst_rv_coords, src_bids)
    out = jax.block_until_ready(out)
    assert out.shape == (M, d_model), out.shape
    assert bool(jnp.all(jnp.isfinite(out)))
    print("KERNEL_OK")
</pallas_src>

<mosaic_0001>
module attributes {stable_mosaic.version = 11 : i64} {
  func.func @_mlp_layer_kernel(%arg0: i32, %arg1: i32, %arg2: i32, %arg3: memref<1x48x256xbf16, #tpu.memory_space<vmem>>, %arg4: memref<1x32x48xbf16, #tpu.memory_space<vmem>>, %arg5: memref<1x48x1xf32, #tpu.memory_space<vmem>>, %arg6: memref<1x48x1xf32, #tpu.memory_space<vmem>>, %arg7: memref<1x256xf32, #tpu.memory_space<vmem>>, %arg8: memref<1x1x32x256xbf16, #tpu.memory_space<vmem>>, %arg9: memref<1x1x32x2xf32, #tpu.memory_space<vmem>>) attributes {dimension_semantics = [#tpu.dimension_semantics<parallel>, #tpu.dimension_semantics<parallel>, #tpu.dimension_semantics<parallel>], iteration_bounds = array<i64: 2, 8, 1>, scalar_prefetch = 0 : i64, scratch_operands = 0 : i64, tpu.core_type = #tpu.core_type<tc>, window_params = [{transform_indices = @transform_0, window_bounds = array<i64: 1, 48, 256>}, {transform_indices = @transform_1, window_bounds = array<i64: 1, 32, 48>}, {transform_indices = @transform_2, window_bounds = array<i64: 1, 48, 1>}, {transform_indices = @transform_3, window_bounds = array<i64: 1, 48, 1>}, {transform_indices = @transform_4, window_bounds = array<i64: 1, 256>}, {transform_indices = @transform_5, window_bounds = array<i64: 1, 1, 32, 256>}, {transform_indices = @transform_6, window_bounds = array<i64: 1, 1, 32, 2>}]} {
    %c0 = arith.constant 0 : index
    %c0_0 = arith.constant 0 : index
    %c0_1 = arith.constant 0 : index
    %0 = vector.load %arg3[%c0, %c0_0, %c0_1] : memref<1x48x256xbf16, #tpu.memory_space<vmem>>, vector<1x48x256xbf16>
    %1 = vector.shape_cast %0 : vector<1x48x256xbf16> to vector<48x256xbf16>
    %c0_2 = arith.constant 0 : index
    %c0_3 = arith.constant 0 : index
    %c0_4 = arith.constant 0 : index
    %2 = vector.load %arg4[%c0_2, %c0_3, %c0_4] : memref<1x32x48xbf16, #tpu.memory_space<vmem>>, vector<1x32x48xbf16>
    %3 = vector.shape_cast %2 : vector<1x32x48xbf16> to vector<32x48xbf16>
    %cst = arith.constant dense<0.000000e+00> : vector<32x256xf32>
    %4 = tpu.matmul %3, %1, %cst {dimension_numbers = #tpu.dot_dimension_numbers<[1], [0], [0], [1], [0, 0, 1, 1], [], []>} : vector<32x48xbf16>, vector<48x256xbf16>, vector<32x256xf32> -> vector<32x256xf32>
    %5 = arith.truncf %4 : vector<32x256xf32> to vector<32x256xbf16>
    %c0_5 = arith.constant 0 : index
    %c0_6 = arith.constant 0 : index
    %c0_7 = arith.constant 0 : index
    %c0_8 = arith.constant 0 : index
    %6 = vector.load %arg8[%c0_5, %c0_6, %c0_7, %c0_8] : memref<1x1x32x256xbf16, #tpu.memory_space<vmem>>, vector<1x1x32x256xbf16>
    %7 = vector.shape_cast %6 : vector<1x1x32x256xbf16> to vector<32x256xbf16>
    %8 = vector.shape_cast %5 : vector<32x256xbf16> to vector<1x1x32x256xbf16>
    tpu.vector_store %arg8[%c0_5, %c0_6, %c0_7, %c0_8], %8 {strides = array<i32>} : memref<1x1x32x256xbf16, #tpu.memory_space<vmem>>, vector<1x1x32x256xbf16>,
    %c0_9 = arith.constant 0 : index
    %c0_10 = arith.constant 0 : index
    %9 = vector.load %arg7[%c0_9, %c0_10] : memref<1x256xf32, #tpu.memory_space<vmem>>, vector<1x256xf32>
    %10 = vector.broadcast %9 : vector<1x256xf32> to vector<32x256xf32>
    %11 = arith.mulf %4, %10 : vector<32x256xf32>
    %cst_11 = arith.constant dense<0.000000e+00> : vector<32xf32>
    %12 = vector.multi_reduction <add>, %11, %cst_11 [1] : vector<32x256xf32> to vector<32xf32>
    %13 = vector.shape_cast %12 : vector<32xf32> to vector<32x1xf32>
    %14 = arith.mulf %11, %4 : vector<32x256xf32>
    %cst_12 = arith.constant dense<0.000000e+00> : vector<32xf32>
    %15 = vector.multi_reduction <add>, %14, %cst_12 [1] : vector<32x256xf32> to vector<32xf32>
    %16 = vector.shape_cast %15 : vector<32xf32> to vector<32x1xf32>
    %17 = tpu.concatenate %13, %16 in 1 : vector<32x1xf32>, vector<32x1xf32> -> vector<32x2xf32>
    %c0_13 = arith.constant 0 : index
    %c0_14 = arith.constant 0 : index
    %c0_15 = arith.constant 0 : index
    %c0_16 = arith.constant 0 : index
    %18 = vector.load %arg9[%c0_13, %c0_14, %c0_15, %c0_16] : memref<1x1x32x2xf32, #tpu.memory_space<vmem>>, vector<1x1x32x2xf32>
    %19 = vector.shape_cast %18 : vector<1x1x32x2xf32> to vector<32x2xf32>
    %20 = vector.shape_cast %17 : vector<32x2xf32> to vector<1x1x32x2xf32>
    tpu.vector_store %arg9[%c0_13, %c0_14, %c0_15, %c0_16], %20 {strides = array<i32>} : memref<1x1x32x2xf32, #tpu.memory_space<vmem>>, vector<1x1x32x2xf32>,
    return
  }
  func.func @transform_0(%arg0: i32, %arg1: i32, %arg2: i32) -> (i32, i32, i32) {
    %c1_i32 = arith.constant 1 : i32
    %0 = arith.muli %arg1, %c1_i32 : i32
    %1 = arith.addi %0, %arg2 : i32
    %c0_i32 = arith.constant 0 : i32
    %c0_i32_0 = arith.constant 0 : i32
    return %arg0, %c0_i32, %1 : i32, i32, i32
  }
  func.func @transform_1(%arg0: i32, %arg1: i32, %arg2: i32) -> (i32, i32, i32) {
    %c0_i32 = arith.constant 0 : i32
    %c0_i32_0 = arith.constant 0 : i32
    %c0_i32_1 = arith.constant 0 : i32
    return %arg0, %c0_i32, %c0_i32_0 : i32, i32, i32
  }
  func.func @transform_2(%arg0: i32, %arg1: i32, %arg2: i32) -> (i32, i32, i32) {
    %c0_i32 = arith.constant 0 : i32
    %c0_i32_0 = arith.constant 0 : i32
    %c0_i32_1 = arith.constant 0 : i32
    return %arg0, %c0_i32, %c0_i32_0 : i32, i32, i32
  }
  func.func @transform_3(%arg0: i32, %arg1: i32, %arg2: i32) -> (i32, i32, i32) {
    %c0_i32 = arith.constant 0 : i32
    %c0_i32_0 = arith.constant 0 : i32
    %c0_i32_1 = arith.constant 0 : i32
    return %arg0, %c0_i32, %c0_i32_0 : i32, i32, i32
  }
  func.func @transform_4(%arg0: i32, %arg1: i32, %arg2: i32) -> (i32, i32) {
    %c0_i32 = arith.constant 0 : i32
    %c0_i32_0 = arith.constant 0 : i32
    return %c0_i32, %arg2 : i32, i32
  }
  func.func @transform_5(%arg0: i32, %arg1: i32, %arg2: i32) -> (i32, i32, i32, i32) {
    %c0_i32 = arith.constant 0 : i32
    %c0_i32_0 = arith.constant 0 : i32
    return %arg0, %arg1, %c0_i32, %arg2 : i32, i32, i32, i32
  }
  func.func @transform_6(%arg0: i32, %arg1: i32, %arg2: i32) -> (i32, i32, i32, i32) {
    %c1_i32 = arith.constant 1 : i32
    %0 = arith.muli %arg1, %c1_i32 : i32
    %1 = arith.addi %0, %arg2 : i32
    %c0_i32 = arith.constant 0 : i32
    %c0_i32_0 = arith.constant 0 : i32
    %c0_i32_1 = arith.constant 0 : i32
    return %arg0, %1, %c0_i32, %c0_i32_0 : i32, i32, i32, i32
  }
}

</mosaic_0001>

<llo_original>
// kernel: tpu_custom_call.1
$region0: #{tpu_custom_call.1}
  #allocation0 [shape = 'u32[]', space=smem, size = 0x4, offset = 0x4, fixed_abs, tag = 'smem constant byte address 0x4 - core index']
  #allocation1 [shape = 'u32[72,128]{1,0:T(1,128)}', space=vmem, size = 0x9000, scoped, tag = 'internal scratch']
  %s0 = inlined_call_operand.hbm [shape: bf16[2,48,2048], index: 0, kind: input, shape index: {}]
  %s1 = inlined_call_operand.vmem [shape: bf16[2,32,48], index: 1, kind: input, shape index: {}]
  %s2 = inlined_call_operand.vmem [shape: f32[2,48,1], index: 2, kind: input, shape index: {}]
  %s3 = inlined_call_operand.vmem [shape: f32[2,48,1], index: 3, kind: input, shape index: {}]
  %s4 = inlined_call_operand.vmem [shape: f32[1,256], index: 4, kind: input, shape index: {}]
  %s5 = inlined_call_operand.hbm [shape: bf16[2,8,32,256], index: 5, kind: output, shape index: {0}]
  %s6 = inlined_call_operand.vmem [shape: f32[2,8,32,2], index: 6, kind: output, shape index: {1}]
  %7 = xla_tuple %s5, %s6
  %s8 = sld [smem:[#allocation0]]
  $region65: #{tpu_custom_call.1} parent=0
    _
  %s10 = ssub.s32 1, %s8
  %s11 = scalar_select 0, %s10, %s8
  $region1: #{tpu_custom_call.1} parent=0
    #allocation2 [shape = 'u8[49152]{0}', space=vmem, size = 0xc000, scoped, tag = 'input window, operand 0']
    #allocation3 [shape = 's32[2]{0}', space=sflag, size = 0x8, scoped, tag = 'scoped memory for tpu_custom_call.1']
    #allocation4 [shape = 's32[2]{0}', space=sflag, size = 0x8, scoped, tag = 'scoped memory for tpu_custom_call.1']
    #allocation5 [shape = 'u8[32768]{0}', space=vmem, size = 0x8000, scoped, tag = 'output window, operand 0']
    %12 = vsyncpa [#allocation3], 0
    %s13 = scalar_lea.sflag [#allocation3], 1
    %14 = vsyncpa %s13, 0
    %15 = vsyncpa [#allocation4], 0
    %s16 = scalar_lea.sflag [#allocation4], 1
    %17 = vsyncpa %s16, 0
    loop: start=0, step=1, limit=18
    $region2: #{tpu_custom_call.1} parent=1 // loop_pre_header
      _
    $region3: #{tpu_custom_call.1} parent=1 // loop_header
      %s19 = sphi 0, %s23
      %p20 = scmp.ge.s32.totalorder %s19, 18
      %s26 = sphi 0, %s45
      %s27 = sphi 0, %s41
      %s28 = sphi 0, %s37
      %s29 = sphi 0, %s26
      %s30 = sphi 0, %s27
      %s31 = sphi 0, %s28
      %s32 = sphi 0, %s29
      %s33 = sphi 0, %s30
      %s34 = sphi 0, %s31
      %s52 = sphi 0, %s54
      %s55 = sphi 0, %s52
      %s56 = sphi 0, %s55
      %s72 = sphi 0, %s56
      %s78 = sphi 0, %s80
      %s81 = sphi 0, %s78
      %s82 = sphi 0, %s81
      %s98 = sphi 0, %s82
      %s104 = sphi 0, %s106
      %s107 = sphi 0, %s104
      %s108 = sphi 0, %s107
      %s124 = sphi 0, %s108
      %s130 = sphi 0, %s132
      %s133 = sphi 0, %s130
      %s134 = sphi 0, %s133
      %s150 = sphi 0, %s134
      %s156 = sphi 0, %s158
      %s159 = sphi 0, %s156
      %s160 = sphi 0, %s159
      %s176 = sphi 0, %s160
      %s186 = sphi 0, %s188
      %s189 = sphi 0, %s186
      %s190 = sphi 0, %s189
      %s206 = sphi 0, %s190
      %s216 = sphi 0, %s218
      %s219 = sphi 0, %s216
      %s220 = sphi 0, %s219
      %s236 = sphi 0, %s220
    $region4: #{tpu_custom_call.1} parent=1 // loop_header_branch
      %22 = sbr.rel (%p20) target = $region8
    $region5: #{tpu_custom_call.1} parent=1 // loop_body
      %s24 = ssub.s32 %s19, 1
      %s25 = ssub.s32 %s19, 2
      %s35 = sadd.s32 1, %s28
      %p36 = scmp.ge.s32.totalorder %s35, 1
      %s37 = scalar_select %p36, 0, %s35
      %s38 = sadd.s32 1, %s27
      %s39 = scalar_select %p36, %s38, %s27
      %p40 = scmp.ge.s32.totalorder %s39, 8
      %s41 = scalar_select %p40, 0, %s39
      %s42 = sadd.s32 1, %s26
      %s43 = scalar_select %p40, %s42, %s26
      %p44 = scmp.ge.s32.totalorder %s43, 2
      %s45 = scalar_select %p44, 0, %s43
      %s46 = sadd.s32 %s27, %s28
      %s47 = sadd.s32 %s41, %s37
      %s48 = ssub.s32 %s26, %s45
      %s49 = ssub.s32 %s46, %s47
      %s50 = sor.u32 %s48, %s49
      %p51 = scmp.eq.s32.totalorder %s50, 0
      %s53 = sadd.s32 %s52, 1
      %s54 = scalar_select %p51, %s52, %s53
      %p57 = pneg %p51
      %p58 = scmp.eq.s32.totalorder %s19, 15
      %p59 = por %p57, %p58
      %p60 = scmp.ne.s32.totalorder %s52, %s55
      %p61 = scmp.eq.s32.totalorder %s19, 0
      %p62 = por %p60, %p61
      %p63 = scmp.ne.s32.totalorder %s52, %s55
      %p64 = scmp.eq.s32.totalorder %s24, 15
      %p65 = por %p63, %p64
      %p66 = scmp.ne.s32.totalorder %s55, %s56
      %p67 = scmp.eq.s32.totalorder %s24, 0
      %p68 = por %p66, %p67
      %p69 = scmp.ne.s32.totalorder %s55, %s56
      %p70 = scmp.eq.s32.totalorder %s25, 15
      %p71 = por %p69, %p70
      %p73 = scmp.ne.s32.totalorder %s56, %s72
      %p74 = scmp.eq.s32.totalorder %s25, 0
      %p75 = por %p73, %p74
      %s76 = ssub.s32 %s26, %s45
      %p77 = scmp.eq.s32.totalorder %s76, 0
      %s79 = sadd.s32 %s78, 1
      %s80 = scalar_select %p77, %s78, %s79
      %p83 = pneg %p77
      %p84 = scmp.eq.s32.totalorder %s19, 15
      %p85 = por %p83, %p84
      %p86 = scmp.ne.s32.totalorder %s78, %s81
      %p87 = scmp.eq.s32.totalorder %s19, 0
      %p88 = por %p86, %p87
      %p89 = scmp.ne.s32.totalorder %s78, %s81
      %p90 = scmp.eq.s32.totalorder %s24, 15
      %p91 = por %p89, %p90
      %p92 = scmp.ne.s32.totalorder %s81, %s82
      %p93 = scmp.eq.s32.totalorder %s24, 0
      %p94 = por %p92, %p93
      %p95 = scmp.ne.s32.totalorder %s81, %s82
      %p96 = scmp.eq.s32.totalorder %s25, 15
      %p97 = por %p95, %p96
      %p99 = scmp.ne.s32.totalorder %s82, %s98
      %p100 = scmp.eq.s32.totalorder %s25, 0
      %p101 = por %p99, %p100
      %s102 = ssub.s32 %s26, %s45
      %p103 = scmp.eq.s32.totalorder %s102, 0
      %s105 = sadd.s32 %s104, 1
      %s106 = scalar_select %p103, %s104, %s105
      %p109 = pneg %p103
      %p110 = scmp.eq.s32.totalorder %s19, 15
      %p111 = por %p109, %p110
      %p112 = scmp.ne.s32.totalorder %s104, %s107
      %p113 = scmp.eq.s32.totalorder %s19, 0
      %p114 = por %p112, %p113
      %p115 = scmp.ne.s32.totalorder %s104, %s107
      %p116 = scmp.eq.s32.totalorder %s24, 15
      %p117 = por %p115, %p116
      %p118 = scmp.ne.s32.totalorder %s107, %s108
      %p119 = scmp.eq.s32.totalorder %s24, 0
      %p120 = por %p118, %p119
      %p121 = scmp.ne.s32.totalorder %s107, %s108
      %p122 = scmp.eq.s32.totalorder %s25, 15
      %p123 = por %p121, %p122
      %p125 = scmp.ne.s32.totalorder %s108, %s124
      %p126 = scmp.eq.s32.totalorder %s25, 0
      %p127 = por %p125, %p126
      %s128 = ssub.s32 %s26, %s45
      %p129 = scmp.eq.s32.totalorder %s128, 0
      %s131 = sadd.s32 %s130, 1
      %s132 = scalar_select %p129, %s130, %s131
      %p135 = pneg %p129
      %p136 = scmp.eq.s32.totalorder %s19, 15
      %p137 = por %p135, %p136
      %p138 = scmp.ne.s32.totalorder %s130, %s133
      %p139 = scmp.eq.s32.totalorder %s19, 0
      %p140 = por %p138, %p139
      %p141 = scmp.ne.s32.totalorder %s130, %s133
      %p142 = scmp.eq.s32.totalorder %s24, 15
      %p143 = por %p141, %p142
      %p144 = scmp.ne.s32.totalorder %s133, %s134
      %p145 = scmp.eq.s32.totalorder %s24, 0
      %p146 = por %p144, %p145
      %p147 = scmp.ne.s32.totalorder %s133, %s134
      %p148 = scmp.eq.s32.totalorder %s25, 15
      %p149 = por %p147, %p148
      %p151 = scmp.ne.s32.totalorder %s134, %s150
      %p152 = scmp.eq.s32.totalorder %s25, 0
      %p153 = por %p151, %p152
      %s154 = ssub.s32 %s28, %s37
      %p155 = scmp.eq.s32.totalorder %s154, 0
      %s157 = sadd.s32 %s156, 1
      %s158 = scalar_select %p155, %s156, %s157
      %p161 = pneg %p155
      %p162 = scmp.eq.s32.totalorder %s19, 15
      %p163 = por %p161, %p162
      %p164 = scmp.ne.s32.totalorder %s156, %s159
      %p165 = scmp.eq.s32.totalorder %s19, 0
      %p166 = por %p164, %p165
      %p167 = scmp.ne.s32.totalorder %s156, %s159
      %p168 = scmp.eq.s32.totalorder %s24, 15
      %p169 = por %p167, %p168
      %p170 = scmp.ne.s32.totalorder %s159, %s160
      %p171 = scmp.eq.s32.totalorder %s24, 0
      %p172 = por %p170, %p171
      %p173 = scmp.ne.s32.totalorder %s159, %s160
      %p174 = scmp.eq.s32.totalorder %s25, 15
      %p175 = por %p173, %p174
      %p177 = scmp.ne.s32.totalorder %s160, %s176
      %p178 = scmp.eq.s32.totalorder %s25, 0
      %p179 = por %p177, %p178
      %s180 = ssub.s32 %s26, %s45
      %s181 = ssub.s32 %s27, %s41
      %s182 = sor.u32 %s180, %s181
      %s183 = ssub.s32 %s28, %s37
      %s184 = sor.u32 %s182, %s183
      %p185 = scmp.eq.s32.totalorder %s184, 0
      %s187 = sadd.s32 %s186, 1
      %s188 = scalar_select %p185, %s186, %s187
      %p191 = pneg %p185
      %p192 = scmp.eq.s32.totalorder %s19, 15
      %p193 = por %p191, %p192
      %p194 = scmp.ne.s32.totalorder %s186, %s189
      %p195 = scmp.eq.s32.totalorder %s19, 0
      %p196 = por %p194, %p195
      %p197 = scmp.ne.s32.totalorder %s186, %s189
      %p198 = scmp.eq.s32.totalorder %s24, 15
      %p199 = por %p197, %p198
      %p200 = scmp.ne.s32.totalorder %s189, %s190
      %p201 = scmp.eq.s32.totalorder %s24, 0
      %p202 = por %p200, %p201
      %p203 = scmp.ne.s32.totalorder %s189, %s190
      %p204 = scmp.eq.s32.totalorder %s25, 15
      %p205 = por %p203, %p204
      %p207 = scmp.ne.s32.totalorder %s190, %s206
      %p208 = scmp.eq.s32.totalorder %s25, 0
      %p209 = por %p207, %p208
      %s210 = sadd.s32 %s27, %s28
      %s211 = sadd.s32 %s41, %s37
      %s212 = ssub.s32 %s26, %s45
      %s213 = ssub.s32 %s210, %s211
      %s214 = sor.u32 %s212, %s213
      %p215 = scmp.eq.s32.totalorder %s214, 0
      %s217 = sadd.s32 %s216, 1
      %s218 = scalar_select %p215, %s216, %s217
      %p221 = pneg %p215
      %p222 = scmp.eq.s32.totalorder %s19, 15
      %p223 = por %p221, %p222
      %p224 = scmp.ne.s32.totalorder %s216, %s219
      %p225 = scmp.eq.s32.totalorder %s19, 0
      %p226 = por %p224, %p225
      %p227 = scmp.ne.s32.totalorder %s216, %s219
      %p228 = scmp.eq.s32.totalorder %s24, 15
      %p229 = por %p227, %p228
      %p230 = scmp.ne.s32.totalorder %s219, %s220
      %p231 = scmp.eq.s32.totalorder %s24, 0
      %p232 = por %p230, %p231
      %p233 = scmp.ne.s32.totalorder %s219, %s220
      %p234 = scmp.eq.s32.totalorder %s25, 15
      %p235 = por %p233, %p234
      %p237 = scmp.ne.s32.totalorder %s220, %s236
      %p238 = scmp.eq.s32.totalorder %s25, 0
      %p239 = por %p237, %p238
      %p240 = scmp.le.s32.totalorder 1, %s19
      %p241 = scmp.lt.s32.totalorder %s19, 17
      %p242 = pnand %p240, %p241
      %p243 = pneg %p242
      // Predicated region
      $region9: #{tpu_custom_call.1} parent=5 // pred_check
        _
      $region10: #{tpu_custom_call.1} parent=5 // pred_check_branch
        %245 = sbr.rel (%p242) target = $region12
      $region11: #{tpu_custom_call.1} parent=5 // pred_region
        %s246 = ssub.s32 %s19, 1
        // Predicated region
        $region13: #{tpu_custom_call.1} parent=11 // pred_check
          %p247 = pneg %p172
        $region14: #{tpu_custom_call.1} parent=11 // pred_check_branch
          %249 = sbr.rel (%p247) target = $region16
        $region15: #{tpu_custom_call.1} parent=11 // pred_region
          %s250 = smul.u32 2, %s31
          %p251 = scmp.lt.s32.totalorder %s250, 1
          %s252 = scalar_select %p251, %s250, 1
          %s253 = scalar_lea.vmem %s4, %s252
          %s254 = smul.u32 2, %s31
        $region16: #{tpu_custom_call.1} parent=11 // pred_fallthru
          _
      $region12: #{tpu_custom_call.1} parent=5 // pred_fallthru
        _
      %p255 = scmp.lt.s32.totalorder %s19, 16
      // Predicated region
      $region17: #{tpu_custom_call.1} parent=5 // pred_check
        %p256 = pneg %p255
      $region18: #{tpu_custom_call.1} parent=5 // pred_check_branch
        %258 = sbr.rel (%p256) target = $region20
      $region19: #{tpu_custom_call.1} parent=5 // pred_region
        // Predicated region
        $region21: #{tpu_custom_call.1} parent=19 // pred_check
          %p259 = pneg %p62
        $region22: #{tpu_custom_call.1} parent=19 // pred_check_branch
          %261 = sbr.rel (%p259) target = $region24
        $region23: #{tpu_custom_call.1} parent=19 // pred_region
          %s262 = sand.u32 %s52, 1
          %s263 = scalar_lea.sflag [#allocation3], %s262
          %s264 = sand.u32 %s52, 1
          %s265 = smul.addr %s264, 48
          %s266 = scalar_lea.vmem [#allocation2], %s265
          %s267 = sadd.s32 %s27, %s28
          %s268 = smul.u32 2, %s267
          %270 = vsyncadd %s263, 0
          %s271 = smul.addr %s26, 96
          %s272 = sadd.s32 %s268, %s271
          %s273 = smul.addr %s272, 4
          %s274 = scalar_lea.hbm %s0, %s273
          %s275 = sshll.u32 %s274, 4
          %s276 = int_to_ptr.hbm [resolvable:$true] %s275
          %s277 = sshll.u32 %s266, 4
          %s278 = int_to_ptr.vmem [resolvable:$true] %s277
          %283 = dma.hbm_to_vmem [thread:$0]  %s276, 768, %s278, %s263, 1024, 128, 8
        $region24: #{tpu_custom_call.1} parent=19 // pred_fallthru
          _
        // Predicated region
        $region25: #{tpu_custom_call.1} parent=19 // pred_check
          %p284 = pneg %p88
        $region26: #{tpu_custom_call.1} parent=19 // pred_check_branch
          %286 = sbr.rel (%p284) target = $region28
        $region27: #{tpu_custom_call.1} parent=19 // pred_region
          %p287 = scmp.lt.s32.totalorder %s26, 1
          %s288 = scalar_select %p287, %s26, 1
          %s289 = smul.addr %s288, 4
          %s290 = smul.addr %s289, 4
          %s291 = scalar_lea.vmem %s1, %s290
        $region28: #{tpu_custom_call.1} parent=19 // pred_fallthru
          _
        // Predicated region
        $region29: #{tpu_custom_call.1} parent=19 // pred_check
          %p292 = pneg %p114
        $region30: #{tpu_custom_call.1} parent=19 // pred_check_branch
          %294 = sbr.rel (%p292) target = $region32
        $region31: #{tpu_custom_call.1} parent=19 // pred_region
          %p295 = scmp.lt.s32.totalorder %s26, 1
          %s296 = scalar_select %p295, %s26, 1
          %s297 = smul.addr %s296, 6
          %s298 = smul.addr %s297, 8
          %s299 = scalar_lea.vmem %s2, %s298
        $region32: #{tpu_custom_call.1} parent=19 // pred_fallthru
          _
        // Predicated region
        $region33: #{tpu_custom_call.1} parent=19 // pred_check
          %p300 = pneg %p140
        $region34: #{tpu_custom_call.1} parent=19 // pred_check_branch
          %302 = sbr.rel (%p300) target = $region36
        $region35: #{tpu_custom_call.1} parent=19 // pred_region
          %p303 = scmp.lt.s32.totalorder %s26, 1
          %s304 = scalar_select %p303, %s26, 1
          %s305 = smul.addr %s304, 6
          %s306 = smul.addr %s305, 8
          %s307 = scalar_lea.vmem %s3, %s306
        $region36: #{tpu_custom_call.1} parent=19 // pred_fallthru
          _
      $region20: #{tpu_custom_call.1} parent=5 // pred_fallthru
        _
      %p308 = scmp.le.s32.totalorder 1, %s19
      %p309 = scmp.lt.s32.totalorder %s19, 17
      %p310 = pnand %p308, %p309
      %p311 = pneg %p310
      // Predicated region
      $region37: #{tpu_custom_call.1} parent=5 // pred_check
        _
      $region38: #{tpu_custom_call.1} parent=5 // pred_check_branch
        %313 = sbr.rel (%p310) target = $region40
      $region39: #{tpu_custom_call.1} parent=5 // pred_region
        %s314 = ssub.s32 %s19, 1
        %s315 = sand.u32 %s55, 1
        %s316 = scalar_lea.sflag [#allocation3], %s315
        %s317 = sand.u32 %s55, 1
        %s318 = smul.addr %s317, 48
        %s319 = scalar_lea.vmem [#allocation2], %s318
        // Predicated region
        $region41: #{tpu_custom_call.1} parent=39 // pred_check
          %p320 = pneg %p68
        $region42: #{tpu_custom_call.1} parent=39 // pred_check_branch
          %322 = sbr.rel (%p320) target = $region44
        $region43: #{tpu_custom_call.1} parent=39 // pred_region
          %324 = dma.done %s316, 768
        $region44: #{tpu_custom_call.1} parent=39 // pred_fallthru
          _
        %s325 = sand.u32 %s55, 1
        %s326 = scalar_lea.sflag [#allocation3], %s325
        %s327 = sand.u32 %s55, 1
        %s328 = smul.addr %s327, 48
        %s329 = scalar_lea.vmem [#allocation2], %s328
        %p330 = pneg %p68
        %p331 = pneg %p65
        %p332 = scmp.lt.s32.totalorder %s29, 1
        %s333 = scalar_select %p332, %s29, 1
        %s334 = smul.addr %s333, 4
        %s335 = smul.addr %s334, 4
        %s336 = scalar_lea.vmem %s1, %s335
        %p337 = pneg %p94
        %p338 = pneg %p91
        %p339 = scmp.lt.s32.totalorder %s29, 1
        %s340 = scalar_select %p339, %s29, 1
        %s341 = smul.addr %s340, 6
        %s342 = smul.addr %s341, 8
        %s343 = scalar_lea.vmem %s2, %s342
        %p344 = pneg %p120
        %p345 = pneg %p117
        %p346 = scmp.lt.s32.totalorder %s29, 1
        %s347 = scalar_select %p346, %s29, 1
        %s348 = smul.addr %s347, 6
        %s349 = smul.addr %s348, 8
        %s350 = scalar_lea.vmem %s3, %s349
        %p351 = pneg %p146
        %p352 = pneg %p143
        %s353 = smul.u32 2, %s31
        %p354 = scmp.lt.s32.totalorder %s353, 1
        %s355 = scalar_select %p354, %s353, 1
        %s356 = scalar_lea.vmem %s4, %s355
        %p357 = pneg %p172
        %p358 = pneg %p169
        %p359 = pneg %p202
        %p360 = pneg %p199
        %s361 = sand.u32 %s189, 1
        %s362 = scalar_lea.sflag [#allocation4], %s361
        %s363 = sand.u32 %s189, 1
        %s364 = smul.addr %s363, 32
        %s365 = scalar_lea.vmem [#allocation5], %s364
        %p366 = pneg %p232
        %p367 = pneg %p229
        %s368 = sadd.s32 %s30, %s31
        %p369 = scmp.lt.s32.totalorder %s29, 1
        %s370 = scalar_select %p369, %s29, 1
        %p371 = scmp.lt.s32.totalorder %s368, 7
        %s372 = scalar_select %p371, %s368, 7
        %s373 = smul.addr %s372, 4
        %s374 = smul.addr %s370, 32
        %s375 = sadd.s32 %s373, %s374
        %s376 = smul.addr %s375, 8
        %s377 = scalar_lea.vmem %s6, %s376
        %s378 = sadd.s32 %s30, %s31
        %s379 = smul.u32 2, %s378
        %p380 = scmp.lt.s32.totalorder %s29, 1
        %s381 = scalar_select %p380, %s29, 1
        %s382 = smul.addr %s381, 4
        %s383 = smul.addr %s382, 4
        %s384 = scalar_lea.vmem %s1, %s383
        %p385 = scmp.lt.s32.totalorder %s29, 1
        %s386 = scalar_select %p385, %s29, 1
        %s387 = smul.addr %s386, 6
        %s388 = smul.addr %s387, 8
        %s389 = scalar_lea.vmem %s2, %s388
        %p390 = scmp.lt.s32.totalorder %s29, 1
        %s391 = scalar_select %p390, %s29, 1
        %s392 = smul.addr %s391, 6
        %s393 = smul.addr %s392, 8
        %s394 = scalar_lea.vmem %s3, %s393
        %s395 = smul.u32 2, %s31
        %p396 = scmp.lt.s32.totalorder %s395, 1
        %s397 = scalar_select %p396, %s395, 1
        %s398 = scalar_lea.vmem %s4, %s397
        %s399 = smul.u32 2, %s31
        %s400 = smul.u32 2, %s31
        %s401 = sadd.s32 %s30, %s31
        %p402 = scmp.lt.s32.totalorder %s29, 1
        %s403 = scalar_select %p402, %s29, 1
        %p404 = scmp.lt.s32.totalorder %s401, 7
        %s405 = scalar_select %p404, %s401, 7
        %s406 = smul.addr %s405, 4
        %s407 = smul.addr %s403, 32
        %s408 = sadd.s32 %s406, %s407
        %s409 = smul.addr %s408, 8
        %s410 = scalar_lea.vmem %s6, %s409
        %s411 = sadd.s32 %s30, %s31
        %v413 = vld [vmem:[%s319] sm:$0xff]
        %v414 = vld [vmem:[%s319 + $0x8] sm:$0xff]
        %v415 = vld [vmem:[%s319 + $0x10] sm:$0xff]
        %v416 = vld [vmem:[%s319 + $0x18] sm:$0xff]
        %v417 = vld [vmem:[%s319 + $0x20] sm:$0xff]
        %v418 = vld [vmem:[%s319 + $0x28] sm:$0xff]
        %v419 = vld [vmem:[%s384] sm:$0xf]
        %v420 = vld [vmem:[%s384 + $0x4] sm:$0xf]
        %v421 = vld [vmem:[%s384 + $0x8] sm:$0xf]
        %v422 = vld [vmem:[%s384 + $0xc] sm:$0xf]
        %v427 = vunpack.c.l.b16 %v419
        %v428 = vunpack.c.l.b16 %v420
        %v429 = vunpack.c.l.b16 %v421
        %v430 = vunpack.c.l.b16 %v422
        %v431 = vpack.c.b16 %v428, %v427
        %v432 = vpack.c.b16 %v430, %v429
        %v439 = vunpack.c.l.b16 %v413
        %v440 = vunpack.c.h.b16 %v413
        %v441 = vunpack.c.l.b16 %v414
        %v442 = vunpack.c.h.b16 %v414
        %v443 = vunpack.c.l.b16 %v415
        %v444 = vunpack.c.h.b16 %v415
        %v445 = vunpack.c.l.b16 %v416
        %v446 = vunpack.c.h.b16 %v416
        %v447 = vunpack.c.l.b16 %v417
        %v448 = vunpack.c.h.b16 %v417
        %v449 = vunpack.c.l.b16 %v418
        %v450 = vunpack.c.h.b16 %v418
        %v451 = vpack.c.b16 %v441, %v439
        %v452 = vpack.c.b16 %v442, %v440
        %v453 = vpack.c.b16 %v445, %v443
        %v454 = vpack.c.b16 %v446, %v444
        %v455 = vpack.c.b16 %v449, %v447
        %v456 = vpack.c.b16 %v450, %v448
        %vm463 = vcmask 392192
        %v465 = vsel %vm463, %v431, 0
        %v468 = vsel %vm463, %v432, 0
        %470 = vmatpush.bf16.msra.mxu0 0
        %471 = vmatpush.bf16.msra.mxu0 0
        %472 = vmatpush.bf16.msra.mxu0 0
        %473 = vmatpush.bf16.msra.mxu0 0
        %474 = vmatpush.bf16.msra.mxu0 0
        %475 = vmatpush.bf16.msra.mxu0 %v455
        %476 = vmatpush.bf16.msra.mxu0 %v453
        %477 = vmatpush.bf16.msra.mxu0 %v451
        %478 = vmatmul.bf16.gmra.mxu0 %v465
        %v479 = vpop.f32.mrf.mxu0
        %v480 = vadd.f32 0.0, %v479
        %v481 = vpop.f32.mrf.mxu0
        %v482 = vadd.f32 0.0, %v481
        %483 = vmatmul.bf16.gmra.mxu0 %v468
        %v484 = vpop.f32.mrf.mxu0
        %v485 = vadd.f32 0.0, %v484
        %v486 = vpop.f32.mrf.mxu0
        %v487 = vadd.f32 0.0, %v486
        %488 = vdwg.mxu0
        %489 = vmatpush.bf16.msra.mxu0 0
        %490 = vmatpush.bf16.msra.mxu0 0
        %491 = vmatpush.bf16.msra.mxu0 0
        %492 = vmatpush.bf16.msra.mxu0 0
        %493 = vmatpush.bf16.msra.mxu0 0
        %494 = vmatpush.bf16.msra.mxu0 %v456
        %495 = vmatpush.bf16.msra.mxu0 %v454
        %496 = vmatpush.bf16.msra.mxu0 %v452
        %497 = vmatmul.bf16.gmra.mxu0 %v465
        %v498 = vpop.f32.mrf.mxu0
        %v499 = vadd.f32 0.0, %v498
        %v500 = vpop.f32.mrf.mxu0
        %v501 = vadd.f32 0.0, %v500
        %502 = vmatmul.bf16.gmra.mxu0 %v468
        %v503 = vpop.f32.mrf.mxu0
        %v504 = vadd.f32 0.0, %v503
        %v505 = vpop.f32.mrf.mxu0
        %v506 = vadd.f32 0.0, %v505
        %507 = vdwg.mxu0
        %v508 = vpack.c.bf16 %v499, %v480
        %v509 = vpack.c.bf16 %v501, %v482
        %v510 = vpack.c.bf16 %v504, %v485
        %v511 = vpack.c.bf16 %v506, %v487
        %512 = vst [vmem:[%s365] sm:$0xff] %v508
        %513 = vst [vmem:[%s365 + $0x8] sm:$0xff] %v509
        %514 = vst [vmem:[%s365 + $0x10] sm:$0xff] %v510
        %515 = vst [vmem:[%s365 + $0x18] sm:$0xff] %v511
        %v516 = vld [vmem:[%s398] sm:$0x3]
        %v518 = vperm.slane %v516, 0
        %v519 = vperm.slane %v516, 1
        %v522 = vmul.f32 %v480, %v518
        %v523 = vmul.f32 %v499, %v519
        %v524 = vmul.f32 %v482, %v518
        %v525 = vmul.f32 %v501, %v519
        %v526 = vmul.f32 %v485, %v518
        %v527 = vmul.f32 %v504, %v519
        %v528 = vmul.f32 %v487, %v518
        %v529 = vmul.f32 %v506, %v519
        %v530 = vadd.f32 %v522, %v523
        %531 = vadd.xlane.f32.xlu0 %v530
        %v532 = vpop.xlane.xlu0 %531
        %v533 = vadd.f32 %v524, %v525
        %534 = vadd.xlane.f32.xlu0 %v533
        %v535 = vpop.xlane.xlu0 %534
        %v536 = vadd.f32 %v526, %v527
        %537 = vadd.xlane.f32.xlu0 %v536
        %v538 = vpop.xlane.xlu0 %537
        %v539 = vadd.f32 %v528, %v529
        %540 = vadd.xlane.f32.xlu0 %v539
        %v541 = vpop.xlane.xlu0 %540
        %v542 = vmul.f32 %v522, %v480
        %v543 = vmul.f32 %v523, %v499
        %v544 = vmul.f32 %v524, %v482
        %v545 = vmul.f32 %v525, %v501
        %v546 = vmul.f32 %v526, %v485
        %v547 = vmul.f32 %v527, %v504
        %v548 = vmul.f32 %v528, %v487
        %v549 = vmul.f32 %v529, %v506
        %v550 = vadd.f32 %v542, %v543
        %551 = vadd.xlane.f32.xlu0 %v550
        %v552 = vpop.xlane.xlu0 %551
        %v553 = vadd.f32 %v544, %v545
        %554 = vadd.xlane.f32.xlu0 %v553
        %v555 = vpop.xlane.xlu0 %554
        %v556 = vadd.f32 %v546, %v547
        %557 = vadd.xlane.f32.xlu0 %v556
        %v558 = vpop.xlane.xlu0 %557
        %v559 = vadd.f32 %v548, %v549
        %560 = vadd.xlane.f32.xlu0 %v559
        %v561 = vpop.xlane.xlu0 %560
        %vm562 = vcmask 7168
        %v563 = vsel %vm562, %v532, %v552
        %v564 = vsel %vm562, %v535, %v555
        %v565 = vsel %vm562, %v538, %v558
        %v566 = vsel %vm562, %v541, %v561
        %vm567 = vcmask 15360
        %568 = vst.msk [vmem:[%s410] sm:$0xff] %vm567, %v563
        %569 = vst.msk [vmem:[%s410 + $0x8] sm:$0xff] %vm567, %v564
        %570 = vst.msk [vmem:[%s410 + $0x10] sm:$0xff] %vm567, %v565
        %571 = vst.msk [vmem:[%s410 + $0x18] sm:$0xff] %vm567, %v566
        %s572 = sand.u32 %s189, 1
        %s573 = scalar_lea.sflag [#allocation4], %s572
        %s574 = sand.u32 %s189, 1
        %s575 = smul.addr %s574, 32
        %s576 = scalar_lea.vmem [#allocation5], %s575
        %s577 = sadd.s32 %s30, %s31
        %p578 = scmp.lt.s32.totalorder %s29, 1
        %s579 = scalar_select %p578, %s29, 1
        %p580 = scmp.lt.s32.totalorder %s577, 7
        %s581 = scalar_select %p580, %s577, 7
        %s582 = smul.addr %s581, 4
        %s583 = smul.addr %s579, 32
        %s584 = sadd.s32 %s582, %s583
        %s585 = smul.addr %s584, 8
        %s586 = scalar_lea.vmem %s6, %s585
        // Predicated region
        $region45: #{tpu_custom_call.1} parent=39 // pred_check
          %p587 = pneg %p199
        $region46: #{tpu_custom_call.1} parent=39 // pred_check_branch
          %589 = sbr.rel (%p587) target = $region48
        $region47: #{tpu_custom_call.1} parent=39 // pred_region
          %s590 = smul.u32 2, %s31
          %592 = vsyncadd %s573, 0
          %s593 = smul.addr %s30, 8
          %s594 = sadd.s32 %s590, %s593
          %s595 = smul.addr %s29, 64
          %s596 = sadd.s32 %s594, %s595
          %s597 = smul.addr %s596, 4
          %s598 = scalar_lea.hbm %s5, %s597
          %s599 = sshll.u32 %s576, 4
          %s600 = int_to_ptr.vmem [resolvable:$true] %s599
          %s601 = sshll.u32 %s598, 4
          %s602 = int_to_ptr.hbm [resolvable:$true] %s601
          %607 = dma.vmem_to_hbm [thread:$0]  %s600, 512, %s602, %s573, 128, 128, 8
        $region48: #{tpu_custom_call.1} parent=39 // pred_fallthru
          _
        // Predicated region
        $region49: #{tpu_custom_call.1} parent=39 // pred_check
          %p608 = pneg %p229
        $region50: #{tpu_custom_call.1} parent=39 // pred_check_branch
          %610 = sbr.rel (%p608) target = $region52
        $region51: #{tpu_custom_call.1} parent=39 // pred_region
          %s611 = sadd.s32 %s30, %s31
        $region52: #{tpu_custom_call.1} parent=39 // pred_fallthru
          _
      $region40: #{tpu_custom_call.1} parent=5 // pred_fallthru
        _
      %p612 = scmp.le.s32.totalorder 2, %s19
      // Predicated region
      $region53: #{tpu_custom_call.1} parent=5 // pred_check
        %p613 = pneg %p612
      $region54: #{tpu_custom_call.1} parent=5 // pred_check_branch
        %615 = sbr.rel (%p613) target = $region56
      $region55: #{tpu_custom_call.1} parent=5 // pred_region
        %s616 = ssub.s32 %s19, 2
        // Predicated region
        $region57: #{tpu_custom_call.1} parent=55 // pred_check
          %p617 = pneg %p205
        $region58: #{tpu_custom_call.1} parent=55 // pred_check_branch
          %619 = sbr.rel (%p617) target = $region60
        $region59: #{tpu_custom_call.1} parent=55 // pred_region
          %s620 = sand.u32 %s190, 1
          %s621 = scalar_lea.sflag [#allocation4], %s620
          %s622 = sand.u32 %s190, 1
          %s623 = smul.addr %s622, 32
          %s624 = scalar_lea.vmem [#allocation5], %s623
          %626 = dma.done %s621, 512
        $region60: #{tpu_custom_call.1} parent=55 // pred_fallthru
          _
        // Predicated region
        $region61: #{tpu_custom_call.1} parent=55 // pred_check
          %p627 = pneg %p235
        $region62: #{tpu_custom_call.1} parent=55 // pred_check_branch
          %629 = sbr.rel (%p627) target = $region64
        $region63: #{tpu_custom_call.1} parent=55 // pred_region
          %s630 = sadd.s32 %s33, %s34
          %p631 = scmp.lt.s32.totalorder %s32, 1
          %s632 = scalar_select %p631, %s32, 1
          %p633 = scmp.lt.s32.totalorder %s630, 7
          %s634 = scalar_select %p633, %s630, 7
          %s635 = smul.addr %s634, 4
          %s636 = smul.addr %s632, 32
          %s637 = sadd.s32 %s635, %s636
          %s638 = smul.addr %s637, 8
          %s639 = scalar_lea.vmem %s6, %s638
        $region64: #{tpu_custom_call.1} parent=55 // pred_fallthru
          _
      $region56: #{tpu_custom_call.1} parent=5 // pred_fallthru
        _
    $region6: #{tpu_custom_call.1} parent=1 // loop_footer
      %s23 = sadd.s32 1, %s19
    $region7: #{tpu_custom_call.1} parent=1 // loop_footer_branch
      %18 = sbr.rel target = $region3
    $region8: #{tpu_custom_call.1} parent=1 // loop_exit
      _
    %640 = vsyncpa [#allocation3], 1
    %s641 = scalar_lea.sflag [#allocation3], 1
    %642 = vsyncpa %s641, 1
    %643 = vsyncpa [#allocation4], 1
    %s644 = scalar_lea.sflag [#allocation4], 1
    %645 = vsyncpa %s644, 1

</llo_original>
